<compile_context>
chip_gen: v5e
topology: v5e:2x2
jax: 0.10.0
libtpu: 0.0.40
codegen_flags: <defaults>
</compile_context>

<pallas_src>
import functools
import numpy as np
import jax
import jax.numpy as jnp
from jax.experimental import pallas as pl
from jax.experimental.pallas import tpu as pltpu


# ----------------------------------------------------------------------------
# Kernels
# ----------------------------------------------------------------------------
def _deconv_taps(x1_ref, w_ref, b_ref):
    # x1_ref: (1, TH*W1, Cin)   flattened x1 row-tile
    # w_ref : (Cin, 4*Cout)     all four 2x2 taps fused on the lane dim
    # b_ref : (1, 4*Cout)
    y = jnp.dot(x1_ref[0], w_ref[...], preferred_element_type=jnp.float32)
    return y + b_ref[...]                                   # (TH*W1, 4*Cout)


def _fused_deconv_add_kernel(x1_ref, w_ref, b_ref, x2_ref, o_ref, *, th, w1, c2):
    # x2_ref / o_ref: (1, TH, 2, W1, 2*Cout) -- free 5-D view of NHWC rows.
    y = _deconv_taps(x1_ref, w_ref, b_ref)                  # cols = (ki, kj, oc)
    for ki in range(2):                                     # static unroll
        yk = y[:, ki * c2:(ki + 1) * c2].reshape(th, w1, c2)
        o_ref[0, :, ki] = (x2_ref[0, :, ki] + yk).astype(o_ref.dtype)


def _deconv_only_kernel(x1_ref, w_ref, b_ref, o_ref, *, th, w1, c2):
    y = _deconv_taps(x1_ref, w_ref, b_ref)
    for ki in range(2):
        o_ref[0, :, ki] = (
            y[:, ki * c2:(ki + 1) * c2].reshape(th, w1, c2).astype(o_ref.dtype))


# ----------------------------------------------------------------------------
# Tile selection: biggest x1-row tile that keeps the double-buffered working
# set well inside every generation's scoped-VMEM default (16 MiB v5e, 32 MiB
# v6e/v7x), while respecting the (8, 128) block divisibility rule.
# ----------------------------------------------------------------------------
def _pick_tile_rows(h1, w1, cin, cout):
    budget = 4 * 1024 * 1024                       # one set of (x1+x2+out) blocks
    per_row = 4 * (w1 * cin + 2 * (2 * w1) * (2 * cout))   # fp32 bytes / x1-row
    cap = max(1, budget // per_row)
    divs = [d for d in range(1, h1 + 1) if h1 % d == 0 and d <= cap]
    if not divs:
        return 1
    aligned = [d for d in divs if d == h1 or (d * w1) % 8 == 0]
    # TODO(synk): widths not a multiple of 8 may force an in-kernel relayout;
    # not tuned (pad W1 upstream if it ever matters).
    return max(aligned) if aligned else max(divs)


# ----------------------------------------------------------------------------
# Public forward: matches up.forward(x1, x2) in NCHW.
# ----------------------------------------------------------------------------
@jax.jit
def up_forward(x1_nchw, x2_nchw, weight, bias):
    B, Cin, H1, W1 = x1_nchw.shape
    Cout = weight.shape[1]
    H2, W2 = x2_nchw.shape[2], x2_nchw.shape[3]
    c2, c4 = 2 * Cout, 4 * Cout

    # NCHW -> NHWC boundary transposes (compute keeps channels on lanes).
    x1 = jnp.transpose(x1_nchw, (0, 2, 3, 1))
    x2 = jnp.transpose(x2_nchw, (0, 2, 3, 1))

    # Fuse the four 2x2 taps: (Cin, Cout, 2, 2) -> (Cin, 4*Cout), cols (ki,kj,oc).
    w4 = jnp.transpose(weight, (0, 2, 3, 1)).reshape(Cin, c4)
    b4 = jnp.tile(bias, 4).reshape(1, c4)

    x1f = x1.reshape(B, H1 * W1, Cin)              # free reshape
    th = _pick_tile_rows(H1, W1, Cin, Cout)
    rt = H1 // th
    grid = (B, rt)
    dims = ("parallel", "parallel")                # disjoint output blocks -> both TCs

    in_specs = [
        pl.BlockSpec((1, th * W1, Cin), lambda b, r: (b, r, 0)),
        pl.BlockSpec((Cin, c4), lambda b, r: (0, 0)),
        pl.BlockSpec((1, c4), lambda b, r: (0, 0)),
    ]
    io_spec = pl.BlockSpec((1, th, 2, W1, c2), lambda b, r: (b, r, 0, 0, 0))

    if (H2, W2) == (2 * H1, 2 * W1):
        # Fast path: ConvTranspose + add fused, one HBM pass, no transpose pass.
        x2v = x2.reshape(B, H1, 2, W1, c2)         # free 5-D view of NHWC
        out5 = pl.pallas_call(
            functools.partial(_fused_deconv_add_kernel, th=th, w1=W1, c2=c2),
            out_shape=jax.ShapeDtypeStruct((B, H1, 2, W1, c2), x2.dtype),
            grid_spec=pltpu.PrefetchScalarGridSpec(
                num_scalar_prefetch=0, grid=grid,
                in_specs=in_specs + [io_spec], out_specs=io_spec),
            compiler_params=pltpu.CompilerParams(dimension_semantics=dims),
        )(x1f, w4, b4, x2v)
        out = out5.reshape(B, 2 * H1, 2 * W1, Cout)
    else:
        # General path (spatial mismatch): deconv in Pallas, shifted add as glue.
        d5 = pl.pallas_call(
            functools.partial(_deconv_only_kernel, th=th, w1=W1, c2=c2),
            out_shape=jax.ShapeDtypeStruct((B, H1, 2, W1, c2), x1.dtype),
            grid_spec=pltpu.PrefetchScalarGridSpec(
                num_scalar_prefetch=0, grid=grid,
                in_specs=in_specs, out_specs=io_spec),
            compiler_params=pltpu.CompilerParams(dimension_semantics=dims),
        )(x1f, w4, b4)
        d = d5.reshape(B, 2 * H1, 2 * W1, Cout)
        # TODO(synk): F.pad-with-offset + add kept as XLA glue for this rare path;
        # fold into the kernel's out index_map if it ever becomes hot.
        diffY, diffX = H2 - 2 * H1, W2 - 2 * W1
        top, left = diffY // 2, diffX // 2
        dh, sh = max(top, 0), max(-top, 0)
        hl = min(2 * H1 - sh, H2 - dh)
        dw, sw = max(left, 0), max(-left, 0)
        wl = min(2 * W1 - sw, W2 - dw)
        out = x2
        if hl > 0 and wl > 0:
            out = out.at[:, dh:dh + hl, dw:dw + wl, :].add(
                d[:, sh:sh + hl, sw:sw + wl, :])
    return jnp.transpose(out, (0, 3, 1, 2))        # NHWC -> NCHW


# ----------------------------------------------------------------------------
# Pure-JAX reference (NCHW) for correctness check.
# ----------------------------------------------------------------------------
def _reference(x1, x2, weight, bias):
    B, Cin, H1, W1 = x1.shape
    Cout = weight.shape[1]
    y = jnp.einsum('bcij,cokl->boikjl', x1, weight)
    y = y.reshape(B, Cout, 2 * H1, 2 * W1) + bias[None, :, None, None]
    H2, W2 = x2.shape[2], x2.shape[3]
    top, left = (H2 - 2 * H1) // 2, (W2 - 2 * W1) // 2
    dh, sh = max(top, 0), max(-top, 0)
    hl = min(2 * H1 - sh, H2 - dh)
    dw, sw = max(left, 0), max(-left, 0)
    wl = min(2 * W1 - sw, W2 - dw)
    out = x2
    if hl > 0 and wl > 0:
        out = out.at[:, :, dh:dh + hl, dw:dw + wl].add(y[:, :, sh:sh + hl, sw:sw + wl])
    return out


if __name__ == "__main__":
    key = jax.random.PRNGKey(0)
    k1, k2, k3, k4, k5 = jax.random.split(key, 5)

    B, in_ch = 2, 4
    Cout = in_ch // 2
    H1 = W1 = 8

    x1 = jax.random.normal(k1, (B, in_ch, H1, W1), jnp.float32)
    x2 = jax.random.normal(k2, (B, Cout, 2 * H1, 2 * W1), jnp.float32)
    weight = 0.1 * jax.random.normal(k3, (in_ch, Cout, 2, 2), jnp.float32)
    bias = 0.1 * jax.random.normal(k4, (Cout,), jnp.float32)

    # Fast (fused) path: x2 is exactly 2x x1 spatially.
    out = jax.block_until_ready(up_forward(x1, x2, weight, bias))
    ref = _reference(x1, x2, weight, bias)
    assert out.shape == (B, Cout, 2 * H1, 2 * W1), out.shape
    np.testing.assert_allclose(np.asarray(out), np.asarray(ref), rtol=1e-5, atol=1e-5)

    # General (padded) path: odd-sized skip connection.
    x2_odd = jax.random.normal(k5, (B, Cout, 2 * H1 + 1, 2 * W1 + 3), jnp.float32)
    out_odd = jax.block_until_ready(up_forward(x1, x2_odd, weight, bias))
    ref_odd = _reference(x1, x2_odd, weight, bias)
    np.testing.assert_allclose(np.asarray(out_odd), np.asarray(ref_odd),
                               rtol=1e-5, atol=1e-5)

    print("KERNEL_OK")
</pallas_src>

<mosaic_0001>
module attributes {stable_mosaic.version = 11 : i64} {
  func.func @_fused_deconv_add_kernel(%arg0: i32, %arg1: i32, %arg2: memref<1x64x4xf32, #tpu.memory_space<vmem>>, %arg3: memref<4x8xf32, #tpu.memory_space<vmem>>, %arg4: memref<1x8xf32, #tpu.memory_space<vmem>>, %arg5: memref<1x8x2x8x4xf32, #tpu.memory_space<vmem>>, %arg6: memref<1x8x2x8x4xf32, #tpu.memory_space<vmem>>) attributes {dimension_semantics = [#tpu.dimension_semantics<parallel>, #tpu.dimension_semantics<parallel>], iteration_bounds = array<i64: 2, 1>, scalar_prefetch = 0 : i64, scratch_operands = 0 : i64, tpu.core_type = #tpu.core_type<tc>, window_params = [{transform_indices = @transform_0, window_bounds = array<i64: 1, 64, 4>}, {pipeline_mode = #tpu.pipeline_mode<synchronous>, transform_indices = @transform_1, window_bounds = array<i64: 4, 8>}, {pipeline_mode = #tpu.pipeline_mode<synchronous>, transform_indices = @transform_2, window_bounds = array<i64: 1, 8>}, {transform_indices = @transform_3, window_bounds = array<i64: 1, 8, 2, 8, 4>}, {transform_indices = @transform_4, window_bounds = array<i64: 1, 8, 2, 8, 4>}]} {
    %c0 = arith.constant 0 : index
    %c0_0 = arith.constant 0 : index
    %c0_1 = arith.constant 0 : index
    %0 = vector.load %arg2[%c0, %c0_0, %c0_1] : memref<1x64x4xf32, #tpu.memory_space<vmem>>, vector<1x64x4xf32>
    %1 = vector.shape_cast %0 : vector<1x64x4xf32> to vector<64x4xf32>
    %c0_2 = arith.constant 0 : index
    %c0_3 = arith.constant 0 : index
    %2 = vector.load %arg3[%c0_2, %c0_3] : memref<4x8xf32, #tpu.memory_space<vmem>>, vector<4x8xf32>
    %cst = arith.constant dense<0.000000e+00> : vector<64x8xf32>
    %3 = tpu.matmul %1, %2, %cst {dimension_numbers = #tpu.dot_dimension_numbers<[1], [0], [0], [1], [0, 0, 1, 1], [], []>} : vector<64x4xf32>, vector<4x8xf32>, vector<64x8xf32> -> vector<64x8xf32>
    %c0_4 = arith.constant 0 : index
    %c0_5 = arith.constant 0 : index
    %4 = vector.load %arg4[%c0_4, %c0_5] : memref<1x8xf32, #tpu.memory_space<vmem>>, vector<1x8xf32>
    %5 = vector.broadcast %4 : vector<1x8xf32> to vector<64x8xf32>
    %6 = arith.addf %3, %5 : vector<64x8xf32>
    %7 = vector.extract_strided_slice %6 {offsets = [0, 0], sizes = [64, 4], strides = [1, 1]} : vector<64x8xf32> to vector<64x4xf32>
    %8 = vector.shape_cast %7 : vector<64x4xf32> to vector<8x8x4xf32>
    %c0_6 = arith.constant 0 : index
    %c0_7 = arith.constant 0 : index
    %c0_8 = arith.constant 0 : index
    %c0_9 = arith.constant 0 : index
    %c0_10 = arith.constant 0 : index
    %9 = vector.load %arg5[%c0_6, %c0_7, %c0_8, %c0_9, %c0_10] : memref<1x8x2x8x4xf32, #tpu.memory_space<vmem>>, vector<1x8x1x8x4xf32>
    %10 = vector.shape_cast %9 : vector<1x8x1x8x4xf32> to vector<8x8x4xf32>
    %11 = arith.addf %10, %8 : vector<8x8x4xf32>
    %c0_11 = arith.constant 0 : index
    %c0_12 = arith.constant 0 : index
    %c0_13 = arith.constant 0 : index
    %c0_14 = arith.constant 0 : index
    %c0_15 = arith.constant 0 : index
    %12 = vector.load %arg6[%c0_11, %c0_12, %c0_13, %c0_14, %c0_15] : memref<1x8x2x8x4xf32, #tpu.memory_space<vmem>>, vector<1x8x1x8x4xf32>
    %13 = vector.shape_cast %12 : vector<1x8x1x8x4xf32> to vector<8x8x4xf32>
    %14 = vector.shape_cast %11 : vector<8x8x4xf32> to vector<1x8x1x8x4xf32>
    tpu.vector_store %arg6[%c0_11, %c0_12, %c0_13, %c0_14, %c0_15], %14 {strides = array<i32>} : memref<1x8x2x8x4xf32, #tpu.memory_space<vmem>>, vector<1x8x1x8x4xf32>,
    %15 = vector.extract_strided_slice %6 {offsets = [0, 4], sizes = [64, 4], strides = [1, 1]} : vector<64x8xf32> to vector<64x4xf32>
    %16 = vector.shape_cast %15 : vector<64x4xf32> to vector<8x8x4xf32>
    %c0_16 = arith.constant 0 : index
    %c0_17 = arith.constant 0 : index
    %c1 = arith.constant 1 : index
    %c0_18 = arith.constant 0 : index
    %c0_19 = arith.constant 0 : index
    %17 = vector.load %arg5[%c0_16, %c0_17, %c1, %c0_18, %c0_19] : memref<1x8x2x8x4xf32, #tpu.memory_space<vmem>>, vector<1x8x1x8x4xf32>
    %18 = vector.shape_cast %17 : vector<1x8x1x8x4xf32> to vector<8x8x4xf32>
    %19 = arith.addf %18, %16 : vector<8x8x4xf32>
    %c0_20 = arith.constant 0 : index
    %c0_21 = arith.constant 0 : index
    %c1_22 = arith.constant 1 : index
    %c0_23 = arith.constant 0 : index
    %c0_24 = arith.constant 0 : index
    %20 = vector.load %arg6[%c0_20, %c0_21, %c1_22, %c0_23, %c0_24] : memref<1x8x2x8x4xf32, #tpu.memory_space<vmem>>, vector<1x8x1x8x4xf32>
    %21 = vector.shape_cast %20 : vector<1x8x1x8x4xf32> to vector<8x8x4xf32>
    %22 = vector.shape_cast %19 : vector<8x8x4xf32> to vector<1x8x1x8x4xf32>
    tpu.vector_store %arg6[%c0_20, %c0_21, %c1_22, %c0_23, %c0_24], %22 {strides = array<i32>} : memref<1x8x2x8x4xf32, #tpu.memory_space<vmem>>, vector<1x8x1x8x4xf32>,
    return
  }
  func.func @transform_0(%arg0: i32, %arg1: i32) -> (i32, i32, i32) {
    %c0_i32 = arith.constant 0 : i32
    %c0_i32_0 = arith.constant 0 : i32
    return %arg0, %arg1, %c0_i32 : i32, i32, i32
  }
  func.func @transform_1(%arg0: i32, %arg1: i32) -> (i32, i32) {
    %c0_i32 = arith.constant 0 : i32
    %c0_i32_0 = arith.constant 0 : i32
    %c0_i32_1 = arith.constant 0 : i32
    return %c0_i32, %c0_i32_0 : i32, i32
  }
  func.func @transform_2(%arg0: i32, %arg1: i32) -> (i32, i32) {
    %c0_i32 = arith.constant 0 : i32
    %c0_i32_0 = arith.constant 0 : i32
    %c0_i32_1 = arith.constant 0 : i32
    return %c0_i32, %c0_i32_0 : i32, i32
  }
  func.func @transform_3(%arg0: i32, %arg1: i32) -> (i32, i32, i32, i32, i32) {
    %c0_i32 = arith.constant 0 : i32
    %c0_i32_0 = arith.constant 0 : i32
    %c0_i32_1 = arith.constant 0 : i32
    %c0_i32_2 = arith.constant 0 : i32
    return %arg0, %arg1, %c0_i32, %c0_i32_0, %c0_i32_1 : i32, i32, i32, i32, i32
  }
  func.func @transform_4(%arg0: i32, %arg1: i32) -> (i32, i32, i32, i32, i32) {
    %c0_i32 = arith.constant 0 : i32
    %c0_i32_0 = arith.constant 0 : i32
    %c0_i32_1 = arith.constant 0 : i32
    %c0_i32_2 = arith.constant 0 : i32
    return %arg0, %arg1, %c0_i32, %c0_i32_0, %c0_i32_1 : i32, i32, i32, i32, i32
  }
}

</mosaic_0001>

<llo_original>
// kernel: tile.8
$region0: #{tile.8}
  #allocation0 [shape = 's32[1]{0}', space=sflag, size = 0x4, scoped, tag = 'scoped memory for tile.8']
  %s0 = inlined_call_operand.vmem [shape: f32[2], index: 0, kind: input, shape index: {}]
  %s1 = inlined_call_operand.vmem [shape: f32[4,2], index: 1, kind: output, shape index: {}]
  // Predicated region
  $region2: #{tile.8} parent=0 // pred_check
    _
  $region3: #{tile.8} parent=0 // pred_check_branch
    %3 = sbr.rel (0) target = $region5
  $region4: #{tile.8} parent=0 // pred_region
    _
  $region5: #{tile.8} parent=0 // pred_fallthru
    _
  %v4 = vld [vmem:[%s0] ss:$0 sm:$0xff]
  %5 = vst [vmem:[%s1] sm:$0xf] %v4

// kernel: tile.9
$region0: #{tile.9}
  %s0 = inlined_call_operand.vmem [shape: f32[4,2], index: 0, kind: input, shape index: {}]
  %s1 = inlined_call_operand.vmem [shape: f32[1,8], index: 1, kind: output, shape index: {}]
  $region1: #{tile.9} parent=0
    #allocation0 [shape = 'u8[4096]{0}', space=vmem, size = 0x1000, scoped, tag = 'scoped mem for output reshape']
    #allocation1 [shape = 'u8[4096]{0}', space=vmem, size = 0x1000, scoped, tag = 'scoped mem for input reshape']
    %s3 = ssub.s32 16, 1
    %v4 = vld [vmem:[%s0] sm:%s3]
    %5 = vst [vmem:[#allocation1] sm:%s3] %v4
    %v6 = vld [vmem:[#allocation1] sm:$0x1]
    %vm7 = vcmask 15360
    %8 = vst.msk [vmem:[#allocation0] sm:$0x1] %vm7, %v6
    %s9 = scalar_lea.vmem [#allocation1], 3
    %v10 = vld [vmem:[%s9] sm:$0x1]
    %11 = vrot.lane.b32.xlu0 %v10, 6
    %v12 = vpop.permute.xlu0 %11
    %vm13 = vcmask 64560
    %14 = vst.msk [vmem:[#allocation0] sm:$0x1] %vm13, %v12
    %s15 = scalar_lea.vmem [#allocation1], 2
    %v16 = vld [vmem:[%s15] sm:$0x1]
    %17 = vrot.lane.b32.xlu0 %v16, 4
    %v18 = vpop.permute.xlu0 %17
    %vm19 = vcmask 48160
    %20 = vst.msk [vmem:[#allocation0] sm:$0x1] %vm19, %v18
    %s21 = scalar_lea.vmem [#allocation1], 1
    %v22 = vld [vmem:[%s21] sm:$0x1]
    %23 = vrot.lane.b32.xlu0 %v22, 2
    %v24 = vpop.permute.xlu0 %23
    %vm25 = vcmask 31760
    %26 = vst.msk [vmem:[#allocation0] sm:$0x1] %vm25, %v24
    %s28 = ssub.s32 2, 1
    %v29 = vld [vmem:[#allocation0] sm:%s28]
    %s31 = ssub.s32 2, 1
    %32 = vst [vmem:[%s1] sm:%s31] %v29

// kernel: up_forward.1
$region0: #{up_forward.1}
  #allocation0 [shape = 'u32[]', space=smem, size = 0x4, offset = 0x4, fixed_abs, tag = 'smem constant byte address 0x4 - core index']
  #allocation1 [shape = 'u32[72,128]{1,0:T(1,128)}', space=vmem, size = 0x9000, scoped, tag = 'internal scratch']
  %s0 = inlined_call_operand.vmem [shape: f32[2,64,4], index: 0, kind: input, shape index: {}]
  %s1 = inlined_call_operand.vmem [shape: f32[4,8], index: 1, kind: input, shape index: {}]
  %s2 = inlined_call_operand.vmem [shape: f32[1,8], index: 2, kind: input, shape index: {}]
  %s3 = inlined_call_operand.vmem [shape: f32[2,8,2,8,4], index: 3, kind: input, shape index: {}]
  %s4 = inlined_call_operand.vmem [shape: f32[2,8,2,8,4], index: 4, kind: output, shape index: {}]
  %s5 = sld [smem:[#allocation0]]
  $region49: #{up_forward.1} parent=0
    _
  %s7 = ssub.s32 1, %s5
  %s8 = scalar_select 0, %s7, %s5
  loop: start=0, step=1, limit=4
  $region2: #{up_forward.1} parent=0 // loop_pre_header
    _
  $region3: #{up_forward.1} parent=0 // loop_header
    %s10 = sphi 0, %s14
    %p11 = scmp.ge.s32.totalorder %s10, 4
    %s17 = sphi 0, %s29
    %s18 = sphi 0, %s25
    %s19 = sphi 0, %s17
    %s20 = sphi 0, %s18
    %s21 = sphi 0, %s19
    %s22 = sphi 0, %s20
    %s34 = sphi 0, %s36
    %s37 = sphi 0, %s34
    %s38 = sphi 0, %s37
    %s54 = sphi 0, %s38
    %s58 = sphi 0, %s58
    %s60 = sphi 0, %s58
    %s61 = sphi 0, %s60
    %s75 = sphi 0, %s61
    %s79 = sphi 0, %s79
    %s81 = sphi 0, %s79
    %s82 = sphi 0, %s81
    %s96 = sphi 0, %s82
    %s104 = sphi 0, %s106
    %s107 = sphi 0, %s104
    %s108 = sphi 0, %s107
    %s124 = sphi 0, %s108
    %s132 = sphi 0, %s134
    %s135 = sphi 0, %s132
    %s136 = sphi 0, %s135
    %s152 = sphi 0, %s136
  $region4: #{up_forward.1} parent=0 // loop_header_branch
    %13 = sbr.rel (%p11) target = $region8
  $region5: #{up_forward.1} parent=0 // loop_body
    %s15 = ssub.s32 %s10, 1
    %s16 = ssub.s32 %s10, 2
    %s23 = sadd.s32 1, %s18
    %p24 = scmp.ge.s32.totalorder %s23, 1
    %s25 = scalar_select %p24, 0, %s23
    %s26 = sadd.s32 1, %s17
    %s27 = scalar_select %p24, %s26, %s17
    %p28 = scmp.ge.s32.totalorder %s27, 2
    %s29 = scalar_select %p28, 0, %s27
    %s30 = ssub.s32 %s17, %s29
    %s31 = ssub.s32 %s18, %s25
    %s32 = sor.u32 %s30, %s31
    %p33 = scmp.eq.s32.totalorder %s32, 0
    %s35 = sadd.s32 %s34, 1
    %s36 = scalar_select %p33, %s34, %s35
    %p39 = pneg %p33
    %p40 = scmp.eq.s32.totalorder %s10, 1
    %p41 = por %p39, %p40
    %p42 = scmp.ne.s32.totalorder %s34, %s37
    %p43 = scmp.eq.s32.totalorder %s10, 0
    %p44 = por %p42, %p43
    %p45 = scmp.ne.s32.totalorder %s34, %s37
    %p46 = scmp.eq.s32.totalorder %s15, 1
    %p47 = por %p45, %p46
    %p48 = scmp.ne.s32.totalorder %s37, %s38
    %p49 = scmp.eq.s32.totalorder %s15, 0
    %p50 = por %p48, %p49
    %p51 = scmp.ne.s32.totalorder %s37, %s38
    %p52 = scmp.eq.s32.totalorder %s16, 1
    %p53 = por %p51, %p52
    %p55 = scmp.ne.s32.totalorder %s38, %s54
    %p56 = scmp.eq.s32.totalorder %s16, 0
    %p57 = por %p55, %p56
    %s59 = sadd.s32 %s58, 1
    %p62 = scmp.eq.s32.totalorder %s10, 1
    %p63 = scmp.ne.s32.totalorder %s58, %s60
    %p64 = scmp.eq.s32.totalorder %s10, 0
    %p65 = por %p63, %p64
    %p66 = scmp.ne.s32.totalorder %s58, %s60
    %p67 = scmp.eq.s32.totalorder %s15, 1
    %p68 = por %p66, %p67
    %p69 = scmp.ne.s32.totalorder %s60, %s61
    %p70 = scmp.eq.s32.totalorder %s15, 0
    %p71 = por %p69, %p70
    %p72 = scmp.ne.s32.totalorder %s60, %s61
    %p73 = scmp.eq.s32.totalorder %s16, 1
    %p74 = por %p72, %p73
    %p76 = scmp.ne.s32.totalorder %s61, %s75
    %p77 = scmp.eq.s32.totalorder %s16, 0
    %p78 = por %p76, %p77
    %s80 = sadd.s32 %s79, 1
    %p83 = scmp.eq.s32.totalorder %s10, 1
    %p84 = scmp.ne.s32.totalorder %s79, %s81
    %p85 = scmp.eq.s32.totalorder %s10, 0
    %p86 = por %p84, %p85
    %p87 = scmp.ne.s32.totalorder %s79, %s81
    %p88 = scmp.eq.s32.totalorder %s15, 1
    %p89 = por %p87, %p88
    %p90 = scmp.ne.s32.totalorder %s81, %s82
    %p91 = scmp.eq.s32.totalorder %s15, 0
    %p92 = por %p90, %p91
    %p93 = scmp.ne.s32.totalorder %s81, %s82
    %p94 = scmp.eq.s32.totalorder %s16, 1
    %p95 = por %p93, %p94
    %p97 = scmp.ne.s32.totalorder %s82, %s96
    %p98 = scmp.eq.s32.totalorder %s16, 0
    %p99 = por %p97, %p98
    %s100 = ssub.s32 %s17, %s29
    %s101 = ssub.s32 %s18, %s25
    %s102 = sor.u32 %s100, %s101
    %p103 = scmp.eq.s32.totalorder %s102, 0
    %s105 = sadd.s32 %s104, 1
    %s106 = scalar_select %p103, %s104, %s105
    %p109 = pneg %p103
    %p110 = scmp.eq.s32.totalorder %s10, 1
    %p111 = por %p109, %p110
    %p112 = scmp.ne.s32.totalorder %s104, %s107
    %p113 = scmp.eq.s32.totalorder %s10, 0
    %p114 = por %p112, %p113
    %p115 = scmp.ne.s32.totalorder %s104, %s107
    %p116 = scmp.eq.s32.totalorder %s15, 1
    %p117 = por %p115, %p116
    %p118 = scmp.ne.s32.totalorder %s107, %s108
    %p119 = scmp.eq.s32.totalorder %s15, 0
    %p120 = por %p118, %p119
    %p121 = scmp.ne.s32.totalorder %s107, %s108
    %p122 = scmp.eq.s32.totalorder %s16, 1
    %p123 = por %p121, %p122
    %p125 = scmp.ne.s32.totalorder %s108, %s124
    %p126 = scmp.eq.s32.totalorder %s16, 0
    %p127 = por %p125, %p126
    %s128 = ssub.s32 %s17, %s29
    %s129 = ssub.s32 %s18, %s25
    %s130 = sor.u32 %s128, %s129
    %p131 = scmp.eq.s32.totalorder %s130, 0
    %s133 = sadd.s32 %s132, 1
    %s134 = scalar_select %p131, %s132, %s133
    %p137 = pneg %p131
    %p138 = scmp.eq.s32.totalorder %s10, 1
    %p139 = por %p137, %p138
    %p140 = scmp.ne.s32.totalorder %s132, %s135
    %p141 = scmp.eq.s32.totalorder %s10, 0
    %p142 = por %p140, %p141
    %p143 = scmp.ne.s32.totalorder %s132, %s135
    %p144 = scmp.eq.s32.totalorder %s15, 1
    %p145 = por %p143, %p144
    %p146 = scmp.ne.s32.totalorder %s135, %s136
    %p147 = scmp.eq.s32.totalorder %s15, 0
    %p148 = por %p146, %p147
    %p149 = scmp.ne.s32.totalorder %s135, %s136
    %p150 = scmp.eq.s32.totalorder %s16, 1
    %p151 = por %p149, %p150
    %p153 = scmp.ne.s32.totalorder %s136, %s152
    %p154 = scmp.eq.s32.totalorder %s16, 0
    %p155 = por %p153, %p154
    %p156 = scmp.le.s32.totalorder 1, %s10
    %p157 = scmp.lt.s32.totalorder %s10, 3
    %p158 = pnand %p156, %p157
    %p159 = pneg %p158
    // Predicated region
    $region9: #{up_forward.1} parent=5 // pred_check
      _
    $region10: #{up_forward.1} parent=5 // pred_check_branch
      %161 = sbr.rel (%p158) target = $region12
    $region11: #{up_forward.1} parent=5 // pred_region
      %s162 = ssub.s32 %s10, 1
      // Predicated region
      $region13: #{up_forward.1} parent=11 // pred_check
        %p163 = pneg %p71
      $region14: #{up_forward.1} parent=11 // pred_check_branch
        %165 = sbr.rel (%p163) target = $region16
      $region15: #{up_forward.1} parent=11 // pred_region
        _
      $region16: #{up_forward.1} parent=11 // pred_fallthru
        _
      // Predicated region
      $region17: #{up_forward.1} parent=11 // pred_check
        %p166 = pneg %p92
      $region18: #{up_forward.1} parent=11 // pred_check_branch
        %168 = sbr.rel (%p166) target = $region20
      $region19: #{up_forward.1} parent=11 // pred_region
        _
      $region20: #{up_forward.1} parent=11 // pred_fallthru
        _
    $region12: #{up_forward.1} parent=5 // pred_fallthru
      _
    %p169 = scmp.lt.s32.totalorder %s10, 2
    // Predicated region
    $region21: #{up_forward.1} parent=5 // pred_check
      %p170 = pneg %p169
    $region22: #{up_forward.1} parent=5 // pred_check_branch
      %172 = sbr.rel (%p170) target = $region24
    $region23: #{up_forward.1} parent=5 // pred_region
      // Predicated region
      $region25: #{up_forward.1} parent=23 // pred_check
        %p173 = pneg %p44
      $region26: #{up_forward.1} parent=23 // pred_check_branch
        %175 = sbr.rel (%p173) target = $region28
      $region27: #{up_forward.1} parent=23 // pred_region
        %s176 = smul.u32 8, %s18
        %p177 = scmp.lt.s32.totalorder %s17, 1
        %s178 = scalar_select %p177, %s17, 1
        %p179 = scmp.lt.s32.totalorder %s176, 7
        %s180 = scalar_select %p179, %s176, 7
        %s181 = smul.addr %s178, 8
        %s182 = sadd.s32 %s180, %s181
        %s183 = smul.addr %s182, 8
        %s184 = scalar_lea.vmem %s0, %s183
        %s185 = smul.u32 8, %s18
      $region28: #{up_forward.1} parent=23 // pred_fallthru
        _
      // Predicated region
      $region29: #{up_forward.1} parent=23 // pred_check
        %p186 = pneg %p114
      $region30: #{up_forward.1} parent=23 // pred_check_branch
        %188 = sbr.rel (%p186) target = $region32
      $region31: #{up_forward.1} parent=23 // pred_region
        %s189 = smul.u32 8, %s18
        %p190 = scmp.lt.s32.totalorder %s17, 1
        %s191 = scalar_select %p190, %s17, 1
        %p192 = scmp.lt.s32.totalorder %s189, 7
        %s193 = scalar_select %p192, %s189, 7
        %s194 = smul.addr %s193, 2
        %s195 = smul.addr %s191, 16
        %s196 = sadd.s32 %s194, %s195
        %s197 = smul.addr %s196, 8
        %s198 = scalar_lea.vmem %s3, %s197
        %s199 = smul.u32 8, %s18
      $region32: #{up_forward.1} parent=23 // pred_fallthru
        _
    $region24: #{up_forward.1} parent=5 // pred_fallthru
      _
    %p200 = scmp.le.s32.totalorder 1, %s10
    %p201 = scmp.lt.s32.totalorder %s10, 3
    %p202 = pnand %p200, %p201
    %p203 = pneg %p202
    // Predicated region
    $region33: #{up_forward.1} parent=5 // pred_check
      _
    $region34: #{up_forward.1} parent=5 // pred_check_branch
      %205 = sbr.rel (%p202) target = $region36
    $region35: #{up_forward.1} parent=5 // pred_region
      %s206 = ssub.s32 %s10, 1
      %s207 = smul.u32 8, %s20
      %p208 = scmp.lt.s32.totalorder %s19, 1
      %s209 = scalar_select %p208, %s19, 1
      %p210 = scmp.lt.s32.totalorder %s207, 7
      %s211 = scalar_select %p210, %s207, 7
      %s212 = smul.addr %s209, 8
      %s213 = sadd.s32 %s211, %s212
      %s214 = smul.addr %s213, 8
      %s215 = scalar_lea.vmem %s0, %s214
      %p216 = pneg %p50
      %p217 = pneg %p47
      %p218 = pneg %p71
      %p219 = pneg %p68
      %p220 = pneg %p92
      %p221 = pneg %p89
      %s222 = smul.u32 8, %s20
      %p223 = scmp.lt.s32.totalorder %s19, 1
      %s224 = scalar_select %p223, %s19, 1
      %p225 = scmp.lt.s32.totalorder %s222, 7
      %s226 = scalar_select %p225, %s222, 7
      %s227 = smul.addr %s226, 2
      %s228 = smul.addr %s224, 16
      %s229 = sadd.s32 %s227, %s228
      %s230 = smul.addr %s229, 8
      %s231 = scalar_lea.vmem %s3, %s230
      %p232 = pneg %p120
      %p233 = pneg %p117
      %p234 = pneg %p148
      %p235 = pneg %p145
      %s236 = smul.u32 8, %s20
      %p237 = scmp.lt.s32.totalorder %s19, 1
      %s238 = scalar_select %p237, %s19, 1
      %p239 = scmp.lt.s32.totalorder %s236, 7
      %s240 = scalar_select %p239, %s236, 7
      %s241 = smul.addr %s240, 2
      %s242 = smul.addr %s238, 16
      %s243 = sadd.s32 %s241, %s242
      %s244 = smul.addr %s243, 8
      %s245 = scalar_lea.vmem %s4, %s244
      %s246 = smul.u32 8, %s20
      %p247 = scmp.lt.s32.totalorder %s19, 1
      %s248 = scalar_select %p247, %s19, 1
      %p249 = scmp.lt.s32.totalorder %s246, 7
      %s250 = scalar_select %p249, %s246, 7
      %s251 = smul.addr %s248, 8
      %s252 = sadd.s32 %s250, %s251
      %s253 = smul.addr %s252, 8
      %s254 = scalar_lea.vmem %s0, %s253
      %s255 = smul.u32 8, %s20
      %s256 = smul.u32 8, %s20
      %p257 = scmp.lt.s32.totalorder %s19, 1
      %s258 = scalar_select %p257, %s19, 1
      %p259 = scmp.lt.s32.totalorder %s256, 7
      %s260 = scalar_select %p259, %s256, 7
      %s261 = smul.addr %s260, 2
      %s262 = smul.addr %s258, 16
      %s263 = sadd.s32 %s261, %s262
      %s264 = smul.addr %s263, 8
      %s265 = scalar_lea.vmem %s3, %s264
      %s266 = smul.u32 8, %s20
      %s267 = smul.u32 8, %s20
      %p268 = scmp.lt.s32.totalorder %s19, 1
      %s269 = scalar_select %p268, %s19, 1
      %p270 = scmp.lt.s32.totalorder %s267, 7
      %s271 = scalar_select %p270, %s267, 7
      %s272 = smul.addr %s271, 2
      %s273 = smul.addr %s269, 16
      %s274 = sadd.s32 %s272, %s273
      %s275 = smul.addr %s274, 8
      %s276 = scalar_lea.vmem %s4, %s275
      %s277 = smul.u32 8, %s20
      %v278 = vld [vmem:[%s254] sm:$0xff]
      %v279 = vld [vmem:[%s254 + $0x8] sm:$0xff]
      %v280 = vld [vmem:[%s254 + $0x10] sm:$0xff]
      %v281 = vld [vmem:[%s254 + $0x18] sm:$0xff]
      %v282 = vld [vmem:[%s254 + $0x20] sm:$0xff]
      %v283 = vld [vmem:[%s254 + $0x28] sm:$0xff]
      %v284 = vld [vmem:[%s254 + $0x30] sm:$0xff]
      %v285 = vld [vmem:[%s254 + $0x38] sm:$0xff]
      %v286 = vld [vmem:[%s1] sm:$0xf]
      %v287 = vld [vmem:[%s2] sm:$0x1]
      %v289 = vperm.slane %v287, 0
      %vm291 = vcmask 31744
      %v293 = vsel %vm291, %v278, 0
      %v296 = vsel %vm291, %v279, 0
      %v299 = vsel %vm291, %v280, 0
      %v302 = vsel %vm291, %v281, 0
      %v305 = vsel %vm291, %v282, 0
      %v308 = vsel %vm291, %v283, 0
      %v311 = vsel %vm291, %v284, 0
      %v314 = vsel %vm291, %v285, 0
      %vm316 = vcmask 1043456
      %v318 = vsel %vm316, %v286, 0
      %320 = vmatpush.msra.mxu0 0.0
      %321 = vmatpush.msra.mxu0 0.0
      %322 = vmatpush.msra.mxu0 0.0
      %323 = vmatpush.msra.mxu0 0.0
      %324 = vmatpush.msra.mxu0 0.0
      %325 = vmatpush.msra.mxu0 0.0
      %326 = vmatpush.msra.mxu0 0.0
      %327 = vmatpush.msra.mxu0 0.0
      %328 = vmatpush.msra.mxu0 0.0
      %329 = vmatpush.msra.mxu0 0.0
      %330 = vmatpush.msra.mxu0 0.0
      %331 = vmatpush.msra.mxu0 0.0
      %332 = vmatpush.msra.mxu0 0.0
      %333 = vmatpush.msra.mxu0 0.0
      %334 = vmatpush.msra.mxu0 0.0
      %335 = vmatpush.msra.mxu0 %v318
      %336 = vmatmul.f32.gmra.mxu0 %v293
      %v337 = vpop.f32.mrf.mxu0
      %v338 = vadd.f32 %v289, %v337
      %339 = vmatmul.f32.gmra.mxu0 %v296
      %v340 = vpop.f32.mrf.mxu0
      %v341 = vadd.f32 %v289, %v340
      %342 = vmatmul.f32.gmra.mxu0 %v299
      %v343 = vpop.f32.mrf.mxu0
      %v344 = vadd.f32 %v289, %v343
      %345 = vmatmul.f32.gmra.mxu0 %v302
      %v346 = vpop.f32.mrf.mxu0
      %v347 = vadd.f32 %v289, %v346
      %348 = vmatmul.f32.gmra.mxu0 %v305
      %v349 = vpop.f32.mrf.mxu0
      %v350 = vadd.f32 %v289, %v349
      %351 = vmatmul.f32.gmra.mxu0 %v308
      %v352 = vpop.f32.mrf.mxu0
      %v353 = vadd.f32 %v289, %v352
      %354 = vmatmul.f32.gmra.mxu0 %v311
      %v355 = vpop.f32.mrf.mxu0
      %v356 = vadd.f32 %v289, %v355
      %357 = vmatmul.f32.gmra.mxu0 %v314
      %v358 = vpop.f32.mrf.mxu0
      %v359 = vadd.f32 %v289, %v358
      %360 = vdwg.mxu0
      %v361 = vld [vmem:[%s265] sm:$0xff]
      %v362 = vld [vmem:[%s265 + $0x10] sm:$0xff]
      %v363 = vld [vmem:[%s265 + $0x20] sm:$0xff]
      %v364 = vld [vmem:[%s265 + $0x30] sm:$0xff]
      %v365 = vld [vmem:[%s265 + $0x40] sm:$0xff]
      %v366 = vld [vmem:[%s265 + $0x50] sm:$0xff]
      %v367 = vld [vmem:[%s265 + $0x60] sm:$0xff]
      %v368 = vld [vmem:[%s265 + $0x70] sm:$0xff]
      %v369 = vadd.f32 %v361, %v338
      %v370 = vadd.f32 %v362, %v341
      %v371 = vadd.f32 %v363, %v344
      %v372 = vadd.f32 %v364, %v347
      %v373 = vadd.f32 %v365, %v350
      %v374 = vadd.f32 %v366, %v353
      %v375 = vadd.f32 %v367, %v356
      %v376 = vadd.f32 %v368, %v359
      %377 = vst.msk [vmem:[%s276] sm:$0xff] %vm291, %v369
      %378 = vst.msk [vmem:[%s276 + $0x10] sm:$0xff] %vm291, %v370
      %379 = vst.msk [vmem:[%s276 + $0x20] sm:$0xff] %vm291, %v371
      %380 = vst.msk [vmem:[%s276 + $0x30] sm:$0xff] %vm291, %v372
      %381 = vst.msk [vmem:[%s276 + $0x40] sm:$0xff] %vm291, %v373
      %382 = vst.msk [vmem:[%s276 + $0x50] sm:$0xff] %vm291, %v374
      %383 = vst.msk [vmem:[%s276 + $0x60] sm:$0xff] %vm291, %v375
      %384 = vst.msk [vmem:[%s276 + $0x70] sm:$0xff] %vm291, %v376
      %s385 = scalar_lea.vmem %s265, 8
      %v386 = vld [vmem:[%s385] sm:$0xff]
      %v387 = vld [vmem:[%s385 + $0x10] sm:$0xff]
      %v388 = vld [vmem:[%s385 + $0x20] sm:$0xff]
      %v389 = vld [vmem:[%s385 + $0x30] sm:$0xff]
      %v390 = vld [vmem:[%s385 + $0x40] sm:$0xff]
      %v391 = vld [vmem:[%s385 + $0x50] sm:$0xff]
      %v392 = vld [vmem:[%s385 + $0x60] sm:$0xff]
      %v393 = vld [vmem:[%s385 + $0x70] sm:$0xff]
      %402 = vrot.lane.b32.xlu0 %v338, 124
      %v403 = vpop.permute.xlu0 %402
      %404 = vrot.lane.b32.xlu0 %v341, 124
      %v405 = vpop.permute.xlu0 %404
      %406 = vrot.lane.b32.xlu0 %v344, 124
      %v407 = vpop.permute.xlu0 %406
      %408 = vrot.lane.b32.xlu0 %v347, 124
      %v409 = vpop.permute.xlu0 %408
      %410 = vrot.lane.b32.xlu0 %v350, 124
      %v411 = vpop.permute.xlu0 %410
      %412 = vrot.lane.b32.xlu0 %v353, 124
      %v413 = vpop.permute.xlu0 %412
      %414 = vrot.lane.b32.xlu0 %v356, 124
      %v415 = vpop.permute.xlu0 %414
      %416 = vrot.lane.b32.xlu0 %v359, 124
      %v417 = vpop.permute.xlu0 %416
      %v426 = vadd.f32 %v386, %v403
      %v427 = vadd.f32 %v387, %v405
      %v428 = vadd.f32 %v388, %v407
      %v429 = vadd.f32 %v389, %v409
      %v430 = vadd.f32 %v390, %v411
      %v431 = vadd.f32 %v391, %v413
      %v432 = vadd.f32 %v392, %v415
      %v433 = vadd.f32 %v393, %v417
      %s434 = scalar_lea.vmem %s276, 8
      %435 = vst.msk [vmem:[%s434] sm:$0xff] %vm291, %v426
      %436 = vst.msk [vmem:[%s434 + $0x10] sm:$0xff] %vm291, %v427
      %437 = vst.msk [vmem:[%s434 + $0x20] sm:$0xff] %vm291, %v428
      %438 = vst.msk [vmem:[%s434 + $0x30] sm:$0xff] %vm291, %v429
      %439 = vst.msk [vmem:[%s434 + $0x40] sm:$0xff] %vm291, %v430
      %440 = vst.msk [vmem:[%s434 + $0x50] sm:$0xff] %vm291, %v431
      %441 = vst.msk [vmem:[%s434 + $0x60] sm:$0xff] %vm291, %v432
      %442 = vst.msk [vmem:[%s434 + $0x70] sm:$0xff] %vm291, %v433
      %s443 = smul.u32 8, %s20
      %p444 = scmp.lt.s32.totalorder %s19, 1
      %s445 = scalar_select %p444, %s19, 1
      %p446 = scmp.lt.s32.totalorder %s443, 7
      %s447 = scalar_select %p446, %s443, 7
      %s448 = smul.addr %s447, 2
      %s449 = smul.addr %s445, 16
      %s450 = sadd.s32 %s448, %s449
      %s451 = smul.addr %s450, 8
      %s452 = scalar_lea.vmem %s4, %s451
      // Predicated region
      $region37: #{up_forward.1} parent=35 // pred_check
        %p453 = pneg %p145
      $region38: #{up_forward.1} parent=35 // pred_check_branch
        %455 = sbr.rel (%p453) target = $region40
      $region39: #{up_forward.1} parent=35 // pred_region
        %s456 = smul.u32 8, %s20
      $region40: #{up_forward.1} parent=35 // pred_fallthru
        _
    $region36: #{up_forward.1} parent=5 // pred_fallthru
      _
    %p457 = scmp.le.s32.totalorder 2, %s10
    // Predicated region
    $region41: #{up_forward.1} parent=5 // pred_check
      %p458 = pneg %p457
    $region42: #{up_forward.1} parent=5 // pred_check_branch
      %460 = sbr.rel (%p458) target = $region44
    $region43: #{up_forward.1} parent=5 // pred_region
      %s461 = ssub.s32 %s10, 2
      // Predicated region
      $region45: #{up_forward.1} parent=43 // pred_check
        %p462 = pneg %p151
      $region46: #{up_forward.1} parent=43 // pred_check_branch
        %464 = sbr.rel (%p462) target = $region48
      $region47: #{up_forward.1} parent=43 // pred_region
        %s465 = smul.u32 8, %s22
        %p466 = scmp.lt.s32.totalorder %s21, 1
        %s467 = scalar_select %p466, %s21, 1
        %p468 = scmp.lt.s32.totalorder %s465, 7
        %s469 = scalar_select %p468, %s465, 7
        %s470 = smul.addr %s469, 2
        %s471 = smul.addr %s467, 16
        %s472 = sadd.s32 %s470, %s471
        %s473 = smul.addr %s472, 8
        %s474 = scalar_lea.vmem %s4, %s473
      $region48: #{up_forward.1} parent=43 // pred_fallthru
        _
    $region44: #{up_forward.1} parent=5 // pred_fallthru
      _
  $region6: #{up_forward.1} parent=0 // loop_footer
    %s14 = sadd.s32 1, %s10
  $region7: #{up_forward.1} parent=0 // loop_footer_branch
    %9 = sbr.rel target = $region3
  $region8: #{up_forward.1} parent=0 // loop_exit
    _

</llo_original>
